<compile_context>
chip_gen: v7x
topology: tpu7x:2x2x1
jax: 0.10.0
libtpu: 0.0.40
codegen_flags: <defaults>
</compile_context>

<pallas_src>
import jax
import jax.numpy as jnp
from jax.experimental import pallas as pl
from jax.experimental.pallas import tpu as pltpu


def _sigmoid_kernel(x_ref, o_ref):
    # Elementwise sigmoid on the current VMEM tile. lax.logistic keeps the
    # transcendental on the EUP slot instead of a multi-op VALU divide.
    o_ref[...] = jax.nn.sigmoid(x_ref[...])


def _sigmoid_2d(x2d, block_rows):
    """Tiled, pipelined elementwise sigmoid over a lane-dense 2D slab."""
    rows, cols = x2d.shape
    itemsize = jnp.dtype(x2d.dtype).itemsize
    total = rows * cols
    grid = (pl.cdiv(rows, block_rows),)
    return pl.pallas_call(
        _sigmoid_kernel,
        out_shape=jax.ShapeDtypeStruct((rows, cols), x2d.dtype),
        grid=grid,
        in_specs=[pl.BlockSpec((block_rows, cols), lambda i: (i, 0))],
        out_specs=pl.BlockSpec((block_rows, cols), lambda i: (i, 0)),
        compiler_params=pltpu.CompilerParams(
            # Row tiles are independent -> shard across TensorCores on v7x.
            dimension_semantics=("parallel",),
            # Explicit scoped-VMEM limit so the ~4 MiB tile target (~16 MiB
            # live with double buffering) is safe on v5e (16 MiB default) and
            # leaves headroom on v7x (32 MiB scoped / 64 MiB physical per TC).
            vmem_limit_bytes=32 * 1024 * 1024,
        ),
        cost_estimate=pl.CostEstimate(
            flops=0,
            transcendentals=total,
            bytes_accessed=2 * total * itemsize,
        ),
    )(x2d)


def _pick_block_rows(rows, cols, dtype):
    """Pick a row-tile size: ~4 MiB per input tile, dtype-aware sublane
    rounding, and >= 2 (preferably even) tiles for v7x megacore balance."""
    itemsize = jnp.dtype(dtype).itemsize
    # Sub-32-bit dtypes pack along sublanes: f32 -> 8, bf16/f16 -> 16, i8 -> 32.
    sublane = max(8, 32 // itemsize)

    # ~4 MiB of input per tile: big enough to amortize the ~0.35 us/step grid
    # overhead (near the measured HBM-roofline knee), small enough that
    # 2x in + 2x out live buffers (~16 MiB) fit every generation's VMEM.
    target_bytes = 4 * 1024 * 1024
    max_block_rows = (target_bytes // (cols * itemsize)) // sublane * sublane
    max_block_rows = max(sublane, max_block_rows)

    # Require at least 2 tiles (even count when cheap) so the "parallel" grid
    # axis actually feeds both TensorCores on v7x.
    min_tiles = 2 if rows >= 2 * sublane else 1
    n_tiles = max(min_tiles, pl.cdiv(rows, max_block_rows))
    if n_tiles > 1 and n_tiles % 2 == 1 and rows >= (n_tiles + 1) * sublane:
        n_tiles += 1

    block_rows = pl.cdiv(pl.cdiv(rows, n_tiles), sublane) * sublane
    # If the rounded tile covers everything (or rows < sublane), fall back to
    # the full row extent, which is always a legal block dim.
    return min(block_rows, rows)


def tudui_forward(x):
    """Applies Sigmoid elementwise, matching Tudui.forward. x is NCHW."""
    orig_shape = x.shape
    total = x.size

    # Pick the widest lane-dense column width that divides the flattened size,
    # so the reshape is a free relayout with no host-side padding copy and the
    # output stores are fully lane-dense / unmasked.
    cols = None
    for cand in (32768, 16384, 8192, 4096, 2048, 1024, 512, 256, 128):
        if total % cand == 0:
            cols = cand
            break

    if cols is not None:
        rows = total // cols
        block_rows = _pick_block_rows(rows, cols, x.dtype)
        out2d = _sigmoid_2d(x.reshape(rows, cols), block_rows)
        return out2d.reshape(orig_shape)

    # Ragged fallback (total not a multiple of 128): stream the 128-aligned
    # prefix through the kernel and finish the <128-element tail with a tiny
    # jnp op.  No full-tensor pad/slice passes.
    lane = 128
    x_flat = x.reshape(-1)
    aligned = (total // lane) * lane
    tail_out = jax.nn.sigmoid(x_flat[aligned:])
    if aligned == 0:
        return tail_out.reshape(orig_shape)
    rows = aligned // lane
    block_rows = _pick_block_rows(rows, lane, x.dtype)
    prefix_out = _sigmoid_2d(x_flat[:aligned].reshape(rows, lane), block_rows)
    return jnp.concatenate([prefix_out.reshape(-1), tail_out]).reshape(orig_shape)


if __name__ == "__main__":
    key = jax.random.PRNGKey(0)
    # Small NCHW input consistent with the module's elementwise forward.
    x = jax.random.normal(key, (2, 4, 16, 16), dtype=jnp.float32)

    out = jax.block_until_ready(tudui_forward(x))

    # Sanity check against plain-JAX reference.
    ref = jax.nn.sigmoid(x)
    assert out.shape == x.shape and out.dtype == x.dtype
    assert jnp.allclose(out, ref, atol=1e-6), "mismatch vs reference sigmoid"

    print("KERNEL_OK")
</pallas_src>

<mosaic_0001>
module attributes {stable_mosaic.version = 11 : i64} {
  func.func @_sigmoid_kernel(%arg0: i32, %arg1: memref<1x2048xf32, #tpu.memory_space<vmem>>, %arg2: memref<1x2048xf32, #tpu.memory_space<vmem>>) attributes {dimension_semantics = [#tpu.dimension_semantics<parallel>], iteration_bounds = array<i64: 1>, scalar_prefetch = 0 : i64, scratch_operands = 0 : i64, tpu.core_type = #tpu.core_type<tc>, window_params = [{transform_indices = @transform_0, window_bounds = array<i64: 1, 2048>}, {transform_indices = @transform_1, window_bounds = array<i64: 1, 2048>}]} {
    %c0 = arith.constant 0 : index
    %c0_0 = arith.constant 0 : index
    %0 = vector.load %arg1[%c0, %c0_0] : memref<1x2048xf32, #tpu.memory_space<vmem>>, vector<1x2048xf32>
    %1 = arith.negf %0 : vector<1x2048xf32>
    %2 = math.exp %1 : vector<1x2048xf32>
    %cst = arith.constant 1.000000e+00 : f32
    %3 = vector.broadcast %cst : f32 to vector<1x2048xf32>
    %4 = arith.addf %3, %2 : vector<1x2048xf32>
    %5 = arith.divf %3, %4 : vector<1x2048xf32>
    %c0_1 = arith.constant 0 : index
    %c0_2 = arith.constant 0 : index
    %6 = vector.load %arg2[%c0_1, %c0_2] : memref<1x2048xf32, #tpu.memory_space<vmem>>, vector<1x2048xf32>
    tpu.vector_store %arg2[%c0_1, %c0_2], %5 {strides = array<i32>} : memref<1x2048xf32, #tpu.memory_space<vmem>>, vector<1x2048xf32>,
    return
  }
  func.func @transform_0(%arg0: i32) -> (i32, i32) {
    %c0_i32 = arith.constant 0 : i32
    %c0_i32_0 = arith.constant 0 : i32
    return %arg0, %c0_i32 : i32, i32
  }
  func.func @transform_1(%arg0: i32) -> (i32, i32) {
    %c0_i32 = arith.constant 0 : i32
    %c0_i32_0 = arith.constant 0 : i32
    return %arg0, %c0_i32 : i32, i32
  }
}

</mosaic_0001>

<llo_original>
// kernel: tpu_custom_call.1
$region0: #{tpu_custom_call.1}
  #allocation0 [shape = 'u32[]', space=smem, size = 0x4, offset = 0x4, fixed_abs, tag = 'smem constant byte address 0x4 - core index']
  #allocation1 [shape = 'u32[144,128]{1,0:T(1,128)}', space=vmem, size = 0x12000, scoped, tag = 'internal scratch']
  %s0 = inlined_call_operand.hbm [shape: f32[1,2048], index: 0, kind: input, shape index: {}]
  %s1 = inlined_call_operand.hbm [shape: f32[1,2048], index: 1, kind: output, shape index: {}]
  %s2 = sld [smem:[#allocation0]]
  $region18: #{tpu_custom_call.1} parent=0
    _
  %s4 = ssub.s32 1, %s2
  %s5 = scalar_select 0, %s4, %s2
  $region1: #{tpu_custom_call.1} parent=0
    #allocation2 [shape = 'u8[8192]{0}', space=vmem, size = 0x2000, scoped, tag = 'input window, operand 0, single buffered']
    #allocation3 [shape = 's32[1]{0}', space=sflag, size = 0x4, scoped, tag = 'scoped memory for tpu_custom_call.1']
    #allocation4 [shape = 's32[1]{0}', space=sflag, size = 0x4, scoped, tag = 'scoped memory for tpu_custom_call.1']
    #allocation5 [shape = 'u8[8192]{0}', space=vmem, size = 0x2000, scoped, tag = 'output window, operand 0, single buffered']
    %6 = vsyncpa [#allocation3], 0
    %7 = vsyncpa [#allocation4], 0
    // Predicated region
    $region2: #{tpu_custom_call.1} parent=1 // pred_check
      _
    $region3: #{tpu_custom_call.1} parent=1 // pred_check_branch
      %9 = sbr.rel (0) target = $region5
    $region4: #{tpu_custom_call.1} parent=1 // pred_region
      %s11 = ssub.s32 256, 256
      %12 = vsyncadd [#allocation3], %s11
      %s14 = sshll.u32 [#allocation2], 4
      %s15 = int_to_ptr.vmem [resolvable:$true] %s14
      %17 = dma.hbm_to_vmem [thread:$0]  %s0, 256, %s15, [#allocation3]
    $region5: #{tpu_custom_call.1} parent=1 // pred_fallthru
      _
    // Predicated region
    $region6: #{tpu_custom_call.1} parent=1 // pred_check
      _
    $region7: #{tpu_custom_call.1} parent=1 // pred_check_branch
      %19 = sbr.rel (0) target = $region9
    $region8: #{tpu_custom_call.1} parent=1 // pred_region
      %20 = dma.done [#allocation3], 256
    $region9: #{tpu_custom_call.1} parent=1 // pred_fallthru
      _
    %v21 = vld [vmem:[#allocation2] sm:$0xff]
    %v22 = vld [vmem:[#allocation2 + $0x8] sm:$0xff]
    %v23 = vxor.u32 %v21, 2147483648
    %v24 = vxor.u32 %v22, 2147483648
    %v25 = vmul.f32 %v23, 1.442695
    %v26 = vpow.pop %v25
    %v27 = vmul.f32 %v24, 1.442695
    %v28 = vpow.pop %v27
    %v29 = vadd.f32 %v26, 1.0
    %v30 = vadd.f32 %v28, 1.0
    %v31 = vrcp.pop %v29
    %v32 = vmul.f32 1.0, %v31
    %v33 = vrcp.pop %v30
    %v34 = vmul.f32 1.0, %v33
    %35 = vst [vmem:[#allocation5] sm:$0xff] %v32
    %36 = vst [vmem:[#allocation5 + $0x8] sm:$0xff] %v34
    // Predicated region
    $region10: #{tpu_custom_call.1} parent=1 // pred_check
      _
    $region11: #{tpu_custom_call.1} parent=1 // pred_check_branch
      %38 = sbr.rel (0) target = $region13
    $region12: #{tpu_custom_call.1} parent=1 // pred_region
      %s40 = ssub.s32 256, 256
      %41 = vsyncadd [#allocation4], %s40
      %s43 = sshll.u32 [#allocation5], 4
      %s44 = int_to_ptr.vmem [resolvable:$true] %s43
      %46 = dma.vmem_to_hbm [thread:$0]  %s44, 256, %s1, [#allocation4]
    $region13: #{tpu_custom_call.1} parent=1 // pred_fallthru
      _
    // Predicated region
    $region14: #{tpu_custom_call.1} parent=1 // pred_check
      _
    $region15: #{tpu_custom_call.1} parent=1 // pred_check_branch
      %48 = sbr.rel (0) target = $region17
    $region16: #{tpu_custom_call.1} parent=1 // pred_region
      %49 = dma.done [#allocation4], 256
    $region17: #{tpu_custom_call.1} parent=1 // pred_fallthru
      _
    %50 = vsyncpa [#allocation3], 1
    %51 = vsyncpa [#allocation4], 1

</llo_original>
